<compile_context>
chip_gen: v5e
topology: v5e:2x2
jax: 0.10.0
libtpu: 0.0.40
codegen_flags: <defaults>
</compile_context>

<pallas_src>
from functools import partial

import numpy as np

import jax
import jax.numpy as jnp
from jax import lax
from jax.experimental import pallas as pl
from jax.experimental.pallas import tpu as pltpu


def _subsampling_kernel(x_ref, s_ref, coef_ref, bias_ref, o_ref, *, num_channels):
    # x_ref   : (N, C, H*W)   f32 VMEM  input, channels on the sublane axis
    # s_ref   : (H*W, Ho*Wo)  bf16 VMEM pooling matrix  S = kron(Ph^T, Pw^T)  (exact 0/1)
    # coef_ref: (C,)          f32 SMEM  per-channel coefficient
    # bias_ref: (C,)          f32 SMEM  per-channel bias
    # o_ref   : (N, C*Ho*Wo)  f32 VMEM  lane-dense flattened output
    xs = jnp.sum(x_ref[...].astype(jnp.float32), axis=1)                    # (N, H*W)
    s = s_ref[...].astype(jnp.float32)                                      # lossless upcast
    pooled = jnp.dot(xs, s, preferred_element_type=jnp.float32)             # (N, Ho*Wo)
    # Per-channel replication + affine done as a cheap lane-concat (no second matmul).
    chunks = [pooled * coef_ref[c] + bias_ref[c] for c in range(num_channels)]
    o_ref[...] = jnp.concatenate(chunks, axis=-1).astype(o_ref.dtype)       # (N, C*Ho*Wo)


def _pool_matrix(out_size: int, in_size: int, kernel_size: int, stride: int) -> np.ndarray:
    """P[i, j] = 1 if j in [i*stride, i*stride + kernel_size), else 0 (VALID padding)."""
    rows = np.arange(out_size)[:, None]
    cols = np.arange(in_size)[None, :]
    start = rows * stride
    return ((cols >= start) & (cols < start + kernel_size)).astype(np.float32)


@partial(jax.jit, static_argnames=("kernel_size", "stride"))
def subsampling_forward(x, coef, bias, kernel_size: int, stride: int):
    """x: (N, C, H, W) float32; coef/bias: (C, 1, 1). Returns (N, C, H_out, W_out)."""
    N, C, H, W = x.shape
    H_out = (H - kernel_size) // stride + 1
    W_out = (W - kernel_size) // stride + 1
    HWo = H_out * W_out

    # Shape-dependent constant (numpy -> baked into the jitted executable).
    ph = _pool_matrix(H_out, H, kernel_size, stride)                 # (Ho, H)
    pw = _pool_matrix(W_out, W, kernel_size, stride)                 # (Wo, W)
    # S[h*W + w, i*Wo + j] = Ph[i, h] * Pw[j, w]  -> pooled = xs @ S in one MXU pass.
    # Stored bf16: entries are exactly 0/1 so the cast is lossless; halves the DMA.
    s_mat = jnp.asarray(np.kron(ph.T, pw.T), dtype=jnp.bfloat16)     # (H*W, Ho*Wo)

    # Per-channel params as flat SMEM scalars.
    coef_v = coef.reshape(-1).astype(jnp.float32)                    # (C,)
    bias_v = bias.reshape(-1).astype(jnp.float32)                    # (C,)

    # Free wrapper-side reshape: channels onto the sublane axis, spatial flattened to lanes.
    x3 = x.reshape(N, C, H * W)

    grid_spec = pltpu.PrefetchScalarGridSpec(
        num_scalar_prefetch=0,
        grid=(1,),                                    # single invocation covers the whole batch
        in_specs=[
            pl.BlockSpec((N, C, H * W), lambda i: (0, 0, 0)),
            pl.BlockSpec((H * W, HWo), lambda i: (0, 0)),
            pl.BlockSpec(memory_space=pltpu.MemorySpace.SMEM),
            pl.BlockSpec(memory_space=pltpu.MemorySpace.SMEM),
        ],
        out_specs=pl.BlockSpec((N, C * HWo), lambda i: (0, 0)),
    )

    out_flat = pl.pallas_call(
        partial(_subsampling_kernel, num_channels=C),
        out_shape=jax.ShapeDtypeStruct((N, C * HWo), x.dtype),
        grid_spec=grid_spec,
        compiler_params=pltpu.CompilerParams(dimension_semantics=("arbitrary",)),
    )(x3, s_mat, coef_v, bias_v)

    # Layout plumbing back to NCHW (column index = c*Ho*Wo + h*Wo + w).
    return out_flat.reshape(N, C, H_out, W_out)


def subsampling_reference(x, coef, bias, kernel_size: int, stride: int):
    """Pure-JAX reference mirroring F.conv2d with an all-ones (C, C, k, k) kernel."""
    C = x.shape[1]
    w = jnp.ones((C, C, kernel_size, kernel_size), dtype=x.dtype)
    out = lax.conv_general_dilated(
        x, w,
        window_strides=(stride, stride),
        padding="VALID",
        dimension_numbers=("NCHW", "OIHW", "NCHW"),
    )
    return out * coef[None] + bias[None]


if __name__ == "__main__":
    # Small shapes consistent with the module: batch=2, channels=4, spatial=16,
    # kernel_size=2, stride=2 (typical LeNet-5 subsampling config).
    N, C, H, W = 2, 4, 16, 16
    kernel_size, stride = 2, 2

    key = jax.random.PRNGKey(0)
    kx, kc = jax.random.split(key)

    x = jax.random.normal(kx, (N, C, H, W), dtype=jnp.float32)
    # Deterministic parameter init matching __init__ shapes:
    #   coef ~ U[0,1) of shape (C,1,1); bias = zeros of shape (C,1,1).
    coef = jax.random.uniform(kc, (C, 1, 1), dtype=jnp.float32)
    bias = jnp.zeros((C, 1, 1), dtype=jnp.float32)

    out = subsampling_forward(x, coef, bias, kernel_size, stride)
    out = jax.block_until_ready(out)

    ref = subsampling_reference(x, coef, bias, kernel_size, stride)
    H_out = (H - kernel_size) // stride + 1
    W_out = (W - kernel_size) // stride + 1
    assert out.shape == (N, C, H_out, W_out)
    assert jnp.allclose(out, ref, atol=1e-4, rtol=1e-4), "Pallas output mismatch vs reference"

    print("KERNEL_OK")
</pallas_src>

<mosaic_0001>
module attributes {stable_mosaic.version = 11 : i64} {
  func.func @_subsampling_kernel(%arg0: i32, %arg1: memref<2x4x256xf32, #tpu.memory_space<vmem>>, %arg2: memref<256x64xbf16, #tpu.memory_space<vmem>>, %arg3: memref<4xf32, #tpu.memory_space<smem>>, %arg4: memref<4xf32, #tpu.memory_space<smem>>, %arg5: memref<2x256xf32, #tpu.memory_space<vmem>>) attributes {dimension_semantics = [#tpu.dimension_semantics<arbitrary>], iteration_bounds = array<i64: 1>, scalar_prefetch = 0 : i64, scratch_operands = 0 : i64, tpu.core_type = #tpu.core_type<tc>, window_params = [{pipeline_mode = #tpu.pipeline_mode<synchronous>, transform_indices = @transform_0, window_bounds = array<i64: 2, 4, 256>}, {pipeline_mode = #tpu.pipeline_mode<synchronous>, transform_indices = @transform_1, window_bounds = array<i64: 256, 64>}, {transform_indices = @transform_2, window_bounds = array<i64: 4>}, {transform_indices = @transform_3, window_bounds = array<i64: 4>}, {pipeline_mode = #tpu.pipeline_mode<synchronous>, transform_indices = @transform_4, window_bounds = array<i64: 2, 256>}]} {
    %c0 = arith.constant 0 : index
    %c0_0 = arith.constant 0 : index
    %c0_1 = arith.constant 0 : index
    %0 = vector.load %arg1[%c0, %c0_0, %c0_1] : memref<2x4x256xf32, #tpu.memory_space<vmem>>, vector<2x4x256xf32>
    %cst = arith.constant dense<0.000000e+00> : vector<2x256xf32>
    %1 = vector.multi_reduction <add>, %0, %cst [1] : vector<2x4x256xf32> to vector<2x256xf32>
    %c0_2 = arith.constant 0 : index
    %c0_3 = arith.constant 0 : index
    %2 = vector.load %arg2[%c0_2, %c0_3] : memref<256x64xbf16, #tpu.memory_space<vmem>>, vector<256x64xbf16>
    %3 = arith.extf %2 : vector<256x64xbf16> to vector<256x64xf32>
    %cst_4 = arith.constant dense<0.000000e+00> : vector<2x64xf32>
    %4 = tpu.matmul %1, %3, %cst_4 {dimension_numbers = #tpu.dot_dimension_numbers<[1], [0], [0], [1], [0, 0, 1, 1], [], []>} : vector<2x256xf32>, vector<256x64xf32>, vector<2x64xf32> -> vector<2x64xf32>
    %c0_5 = arith.constant 0 : index
    %5 = memref.load %arg3[%c0_5] : memref<4xf32, #tpu.memory_space<smem>>
    %6 = vector.broadcast %5 : f32 to vector<2x64xf32>
    %7 = arith.mulf %4, %6 : vector<2x64xf32>
    %c0_6 = arith.constant 0 : index
    %8 = memref.load %arg4[%c0_6] : memref<4xf32, #tpu.memory_space<smem>>
    %9 = vector.broadcast %8 : f32 to vector<2x64xf32>
    %10 = arith.addf %7, %9 : vector<2x64xf32>
    %c1 = arith.constant 1 : index
    %11 = memref.load %arg3[%c1] : memref<4xf32, #tpu.memory_space<smem>>
    %12 = vector.broadcast %11 : f32 to vector<2x64xf32>
    %13 = arith.mulf %4, %12 : vector<2x64xf32>
    %c1_7 = arith.constant 1 : index
    %14 = memref.load %arg4[%c1_7] : memref<4xf32, #tpu.memory_space<smem>>
    %15 = vector.broadcast %14 : f32 to vector<2x64xf32>
    %16 = arith.addf %13, %15 : vector<2x64xf32>
    %c2 = arith.constant 2 : index
    %17 = memref.load %arg3[%c2] : memref<4xf32, #tpu.memory_space<smem>>
    %18 = vector.broadcast %17 : f32 to vector<2x64xf32>
    %19 = arith.mulf %4, %18 : vector<2x64xf32>
    %c2_8 = arith.constant 2 : index
    %20 = memref.load %arg4[%c2_8] : memref<4xf32, #tpu.memory_space<smem>>
    %21 = vector.broadcast %20 : f32 to vector<2x64xf32>
    %22 = arith.addf %19, %21 : vector<2x64xf32>
    %c3 = arith.constant 3 : index
    %23 = memref.load %arg3[%c3] : memref<4xf32, #tpu.memory_space<smem>>
    %24 = vector.broadcast %23 : f32 to vector<2x64xf32>
    %25 = arith.mulf %4, %24 : vector<2x64xf32>
    %c3_9 = arith.constant 3 : index
    %26 = memref.load %arg4[%c3_9] : memref<4xf32, #tpu.memory_space<smem>>
    %27 = vector.broadcast %26 : f32 to vector<2x64xf32>
    %28 = arith.addf %25, %27 : vector<2x64xf32>
    %29 = tpu.concatenate %10, %16, %22, %28 in 1 : vector<2x64xf32>, vector<2x64xf32>, vector<2x64xf32>, vector<2x64xf32> -> vector<2x256xf32>
    %c0_10 = arith.constant 0 : index
    %c0_11 = arith.constant 0 : index
    %30 = vector.load %arg5[%c0_10, %c0_11] : memref<2x256xf32, #tpu.memory_space<vmem>>, vector<2x256xf32>
    tpu.vector_store %arg5[%c0_10, %c0_11], %29 {strides = array<i32>} : memref<2x256xf32, #tpu.memory_space<vmem>>, vector<2x256xf32>,
    return
  }
  func.func @transform_0(%arg0: i32) -> (i32, i32, i32) {
    %c0_i32 = arith.constant 0 : i32
    %c0_i32_0 = arith.constant 0 : i32
    %c0_i32_1 = arith.constant 0 : i32
    %c0_i32_2 = arith.constant 0 : i32
    return %c0_i32, %c0_i32_0, %c0_i32_1 : i32, i32, i32
  }
  func.func @transform_1(%arg0: i32) -> (i32, i32) {
    %c0_i32 = arith.constant 0 : i32
    %c0_i32_0 = arith.constant 0 : i32
    %c0_i32_1 = arith.constant 0 : i32
    return %c0_i32, %c0_i32_0 : i32, i32
  }
  func.func @transform_2(%arg0: i32) -> i32 {
    %c0_i32 = arith.constant 0 : i32
    %c0_i32_0 = arith.constant 0 : i32
    return %c0_i32 : i32
  }
  func.func @transform_3(%arg0: i32) -> i32 {
    %c0_i32 = arith.constant 0 : i32
    %c0_i32_0 = arith.constant 0 : i32
    return %c0_i32 : i32
  }
  func.func @transform_4(%arg0: i32) -> (i32, i32) {
    %c0_i32 = arith.constant 0 : i32
    %c0_i32_0 = arith.constant 0 : i32
    %c0_i32_1 = arith.constant 0 : i32
    return %c0_i32, %c0_i32_0 : i32, i32
  }
}

</mosaic_0001>

<llo_original>
// kernel: subsampling_forward.1
$region0: #{subsampling_forward.1}
  #allocation0 [shape = 'u32[]', space=smem, size = 0x4, offset = 0x4, fixed_abs, tag = 'smem constant byte address 0x4 - core index']
  #allocation1 [shape = 'u32[72,128]{1,0:T(1,128)}', space=vmem, size = 0x9000, scoped, tag = 'internal scratch']
  %s0 = inlined_call_operand.vmem [shape: f32[2,4,256], index: 0, kind: input, shape index: {}]
  %s1 = inlined_call_operand.vmem [shape: bf16[256,64], index: 1, kind: input, shape index: {}]
  %s2 = inlined_call_operand.vmem [shape: f32[4], index: 2, kind: input, shape index: {}]
  %s3 = inlined_call_operand.vmem [shape: f32[4], index: 3, kind: input, shape index: {}]
  %s4 = inlined_call_operand.vmem [shape: f32[2,256], index: 4, kind: output, shape index: {}]
  %s5 = sld [smem:[#allocation0]]
  $region34: #{subsampling_forward.1} parent=0
    _
  %s7 = ssub.s32 1, %s5
  %s8 = scalar_select 0, %s7, %s5
  $region1: #{subsampling_forward.1} parent=0
    #allocation2 [shape = 'u8[512]{0}', space=smem, size = 0x200, scoped, tag = 'input window, operand 2, single buffered']
    #allocation3 [shape = 's32[1]{0}', space=sflag, size = 0x4, scoped, tag = 'scoped memory for subsampling_forward.1']
    #allocation4 [shape = 'u8[512]{0}', space=smem, size = 0x200, scoped, tag = 'input window, operand 3, single buffered']
    #allocation5 [shape = 's32[1]{0}', space=sflag, size = 0x4, scoped, tag = 'scoped memory for subsampling_forward.1']
    %9 = vsyncpa [#allocation3], 0
    %10 = vsyncpa [#allocation5], 0
    // Predicated region
    $region2: #{subsampling_forward.1} parent=1 // pred_check
      _
    $region3: #{subsampling_forward.1} parent=1 // pred_check_branch
      %12 = sbr.rel (0) target = $region5
    $region4: #{subsampling_forward.1} parent=1 // pred_region
      _
    $region5: #{subsampling_forward.1} parent=1 // pred_fallthru
      _
    // Predicated region
    $region6: #{subsampling_forward.1} parent=1 // pred_check
      _
    $region7: #{subsampling_forward.1} parent=1 // pred_check_branch
      %14 = sbr.rel (0) target = $region9
    $region8: #{subsampling_forward.1} parent=1 // pred_region
      _
    $region9: #{subsampling_forward.1} parent=1 // pred_fallthru
      _
    // Predicated region
    $region10: #{subsampling_forward.1} parent=1 // pred_check
      _
    $region11: #{subsampling_forward.1} parent=1 // pred_check_branch
      %16 = sbr.rel (0) target = $region13
    $region12: #{subsampling_forward.1} parent=1 // pred_region
      %18 = vsyncadd [#allocation3], 0
      %s20 = sshll.u32 %s2, 4
      %s21 = int_to_ptr.vmem [resolvable:$true] %s20
      %23 = dma.vmem_to_smem %s21, 16, [#allocation2], [#allocation3]
    $region13: #{subsampling_forward.1} parent=1 // pred_fallthru
      _
    // Predicated region
    $region14: #{subsampling_forward.1} parent=1 // pred_check
      _
    $region15: #{subsampling_forward.1} parent=1 // pred_check_branch
      %25 = sbr.rel (0) target = $region17
    $region16: #{subsampling_forward.1} parent=1 // pred_region
      %27 = vsyncadd [#allocation5], 0
      %s29 = sshll.u32 %s3, 4
      %s30 = int_to_ptr.vmem [resolvable:$true] %s29
      %32 = dma.vmem_to_smem %s30, 16, [#allocation4], [#allocation5]
    $region17: #{subsampling_forward.1} parent=1 // pred_fallthru
      _
    // Predicated region
    $region18: #{subsampling_forward.1} parent=1 // pred_check
      _
    $region19: #{subsampling_forward.1} parent=1 // pred_check_branch
      %34 = sbr.rel (0) target = $region21
    $region20: #{subsampling_forward.1} parent=1 // pred_region
      %36 = dma.done [#allocation3], 16
    $region21: #{subsampling_forward.1} parent=1 // pred_fallthru
      _
    // Predicated region
    $region22: #{subsampling_forward.1} parent=1 // pred_check
      _
    $region23: #{subsampling_forward.1} parent=1 // pred_check_branch
      %38 = sbr.rel (0) target = $region25
    $region24: #{subsampling_forward.1} parent=1 // pred_region
      %40 = dma.done [#allocation5], 16
    $region25: #{subsampling_forward.1} parent=1 // pred_fallthru
      _
    %41 = sfence
    %v42 = vld [vmem:[%s0] sm:$0xff]
    %v43 = vld [vmem:[%s0 + $0x8] sm:$0xff]
    %46 = vst [vmem:[#allocation1] ss:$2 sm:$0xff] %v42
    %v47 = vld.sshfl [vmem:[#allocation1] sm:$0xff pattern:$0x75316420]
    %v48 = vld.sshfl [vmem:[#allocation1 + $0x8] sm:$0xff pattern:$0x75316420]
    %s49 = scalar_lea.vmem [#allocation1], 16
    %50 = vst [vmem:[%s49] ss:$2 sm:$0xff] %v43
    %v51 = vld.sshfl [vmem:[#allocation1 + $0x10] sm:$0xff pattern:$0x75316420]
    %v52 = vld.sshfl [vmem:[#allocation1 + $0x18] sm:$0xff pattern:$0x75316420]
    %vm57 = vcmask 1043456
    %v58 = vsel %vm57, %v47, 0.0
    %v59 = vrot.slane %v58, 4
    %v60 = vadd.f32 %v58, %v59
    %v61 = vrot.slane %v60, 2
    %v62 = vadd.f32 %v60, %v61
    %v63 = vrot.slane %v62, 1
    %v64 = vadd.f32 %v62, %v63
    %v65 = vsel %vm57, %v48, 0.0
    %v66 = vrot.slane %v65, 4
    %v67 = vadd.f32 %v65, %v66
    %v68 = vrot.slane %v67, 2
    %v69 = vadd.f32 %v67, %v68
    %v70 = vrot.slane %v69, 1
    %v71 = vadd.f32 %v69, %v70
    %v72 = vsel %vm57, %v51, 0.0
    %v73 = vrot.slane %v72, 4
    %v74 = vadd.f32 %v72, %v73
    %v75 = vrot.slane %v74, 2
    %v76 = vadd.f32 %v74, %v75
    %v77 = vrot.slane %v76, 1
    %v78 = vadd.f32 %v76, %v77
    %v79 = vsel %vm57, %v52, 0.0
    %v80 = vrot.slane %v79, 4
    %v81 = vadd.f32 %v79, %v80
    %v82 = vrot.slane %v81, 2
    %v83 = vadd.f32 %v81, %v82
    %v84 = vrot.slane %v83, 1
    %v85 = vadd.f32 %v83, %v84
    %v86 = vld [vmem:[%s1] sm:$0xf]
    %v87 = vld [vmem:[%s1 + $0x4] sm:$0xf]
    %v88 = vld [vmem:[%s1 + $0x8] sm:$0xf]
    %v89 = vld [vmem:[%s1 + $0xc] sm:$0xf]
    %v90 = vld [vmem:[%s1 + $0x10] sm:$0xf]
    %v91 = vld [vmem:[%s1 + $0x14] sm:$0xf]
    %v92 = vld [vmem:[%s1 + $0x18] sm:$0xf]
    %v93 = vld [vmem:[%s1 + $0x1c] sm:$0xf]
    %v94 = vld [vmem:[%s1 + $0x20] sm:$0xf]
    %v95 = vld [vmem:[%s1 + $0x24] sm:$0xf]
    %v96 = vld [vmem:[%s1 + $0x28] sm:$0xf]
    %v97 = vld [vmem:[%s1 + $0x2c] sm:$0xf]
    %v98 = vld [vmem:[%s1 + $0x30] sm:$0xf]
    %v99 = vld [vmem:[%s1 + $0x34] sm:$0xf]
    %v100 = vld [vmem:[%s1 + $0x38] sm:$0xf]
    %v101 = vld [vmem:[%s1 + $0x3c] sm:$0xf]
    %v102 = vld [vmem:[%s1 + $0x40] sm:$0xf]
    %v103 = vld [vmem:[%s1 + $0x44] sm:$0xf]
    %v104 = vld [vmem:[%s1 + $0x48] sm:$0xf]
    %v105 = vld [vmem:[%s1 + $0x4c] sm:$0xf]
    %v106 = vld [vmem:[%s1 + $0x50] sm:$0xf]
    %v107 = vld [vmem:[%s1 + $0x54] sm:$0xf]
    %v108 = vld [vmem:[%s1 + $0x58] sm:$0xf]
    %v109 = vld [vmem:[%s1 + $0x5c] sm:$0xf]
    %v110 = vld [vmem:[%s1 + $0x60] sm:$0xf]
    %v111 = vld [vmem:[%s1 + $0x64] sm:$0xf]
    %v112 = vld [vmem:[%s1 + $0x68] sm:$0xf]
    %v113 = vld [vmem:[%s1 + $0x6c] sm:$0xf]
    %v114 = vld [vmem:[%s1 + $0x70] sm:$0xf]
    %v115 = vld [vmem:[%s1 + $0x74] sm:$0xf]
    %v116 = vld [vmem:[%s1 + $0x78] sm:$0xf]
    %v117 = vld [vmem:[%s1 + $0x7c] sm:$0xf]
    %v118 = vunpack.c.l.bf16 %v86
    %v119 = vunpack.c.l.bf16 %v87
    %v120 = vunpack.c.l.bf16 %v88
    %v121 = vunpack.c.l.bf16 %v89
    %v122 = vunpack.c.l.bf16 %v90
    %v123 = vunpack.c.l.bf16 %v91
    %v124 = vunpack.c.l.bf16 %v92
    %v125 = vunpack.c.l.bf16 %v93
    %v126 = vunpack.c.l.bf16 %v94
    %v127 = vunpack.c.l.bf16 %v95
    %v128 = vunpack.c.l.bf16 %v96
    %v129 = vunpack.c.l.bf16 %v97
    %v130 = vunpack.c.l.bf16 %v98
    %v131 = vunpack.c.l.bf16 %v99
    %v132 = vunpack.c.l.bf16 %v100
    %v133 = vunpack.c.l.bf16 %v101
    %v134 = vunpack.c.l.bf16 %v102
    %v135 = vunpack.c.l.bf16 %v103
    %v136 = vunpack.c.l.bf16 %v104
    %v137 = vunpack.c.l.bf16 %v105
    %v138 = vunpack.c.l.bf16 %v106
    %v139 = vunpack.c.l.bf16 %v107
    %v140 = vunpack.c.l.bf16 %v108
    %v141 = vunpack.c.l.bf16 %v109
    %v142 = vunpack.c.l.bf16 %v110
    %v143 = vunpack.c.l.bf16 %v111
    %v144 = vunpack.c.l.bf16 %v112
    %v145 = vunpack.c.l.bf16 %v113
    %v146 = vunpack.c.l.bf16 %v114
    %v147 = vunpack.c.l.bf16 %v115
    %v148 = vunpack.c.l.bf16 %v116
    %v149 = vunpack.c.l.bf16 %v117
    %vm154 = vcmask 1041409
    %v155 = vsel %vm154, %v78, %v64
    %v156 = vsel %vm154, %v85, %v71
    %159 = vmatpush.msra.mxu0 %v133
    %160 = vmatpush.msra.mxu0 %v132
    %161 = vmatpush.msra.mxu0 %v131
    %162 = vmatpush.msra.mxu0 %v130
    %163 = vmatpush.msra.mxu0 %v129
    %164 = vmatpush.msra.mxu0 %v128
    %165 = vmatpush.msra.mxu0 %v127
    %166 = vmatpush.msra.mxu0 %v126
    %167 = vmatpush.msra.mxu0 %v125
    %168 = vmatpush.msra.mxu0 %v124
    %169 = vmatpush.msra.mxu0 %v123
    %170 = vmatpush.msra.mxu0 %v122
    %171 = vmatpush.msra.mxu0 %v121
    %172 = vmatpush.msra.mxu0 %v120
    %173 = vmatpush.msra.mxu0 %v119
    %174 = vmatpush.msra.mxu0 %v118
    %175 = vmatmul.f32.gmra.mxu0 %v155
    %v176 = vpop.f32.mrf.mxu0
    %v177 = vadd.f32 0.0, %v176
    %178 = vdwg.mxu0
    %179 = vmatpush.msra.mxu0 %v149
    %180 = vmatpush.msra.mxu0 %v148
    %181 = vmatpush.msra.mxu0 %v147
    %182 = vmatpush.msra.mxu0 %v146
    %183 = vmatpush.msra.mxu0 %v145
    %184 = vmatpush.msra.mxu0 %v144
    %185 = vmatpush.msra.mxu0 %v143
    %186 = vmatpush.msra.mxu0 %v142
    %187 = vmatpush.msra.mxu0 %v141
    %188 = vmatpush.msra.mxu0 %v140
    %189 = vmatpush.msra.mxu0 %v139
    %190 = vmatpush.msra.mxu0 %v138
    %191 = vmatpush.msra.mxu0 %v137
    %192 = vmatpush.msra.mxu0 %v136
    %193 = vmatpush.msra.mxu0 %v135
    %194 = vmatpush.msra.mxu0 %v134
    %195 = vmatmul.f32.gmra.mxu0 %v156
    %v196 = vpop.f32.mrf.mxu0
    %v197 = vadd.f32 %v177, %v196
    %198 = vdwg.mxu0
    %s199 = sld [smem:[#allocation2]]
    %v200 = vstv %s199
    %v201 = vmul.f32 %v197, %v200
    %s202 = sld [smem:[#allocation4]]
    %v203 = vstv %s202
    %v204 = vadd.f32 %v201, %v203
    %s205 = sld [smem:[#allocation2 + $0x1]]
    %v206 = vstv %s205
    %v207 = vmul.f32 %v197, %v206
    %s208 = sld [smem:[#allocation4 + $0x1]]
    %v209 = vstv %s208
    %v210 = vadd.f32 %v207, %v209
    %s211 = sld [smem:[#allocation2 + $0x2]]
    %v212 = vstv %s211
    %v213 = vmul.f32 %v197, %v212
    %s214 = sld [smem:[#allocation4 + $0x2]]
    %v215 = vstv %s214
    %v216 = vadd.f32 %v213, %v215
    %s217 = sld [smem:[#allocation2 + $0x3]]
    %v218 = vstv %s217
    %v219 = vmul.f32 %v197, %v218
    %s220 = sld [smem:[#allocation4 + $0x3]]
    %v221 = vstv %s220
    %v222 = vadd.f32 %v219, %v221
    %224 = vrot.lane.b32.xlu0 %v210, 64
    %v225 = vpop.permute.xlu0 %224
    %228 = vrot.lane.b32.xlu0 %v222, 64
    %v229 = vpop.permute.xlu0 %228
    %vm231 = vcmask 523264
    %v232 = vsel %vm231, %v204, %v225
    %v233 = vsel %vm231, %v216, %v229
    %v236 = vrot.slane %v233, 6
    %vm237 = vcmask 1041408
    %v238 = vsel %vm237, %v232, %v236
    %240 = vst [vmem:[%s4] sm:$0xf] %v238
    // Predicated region
    $region26: #{subsampling_forward.1} parent=1 // pred_check
      _
    $region27: #{subsampling_forward.1} parent=1 // pred_check_branch
      %242 = sbr.rel (0) target = $region29
    $region28: #{subsampling_forward.1} parent=1 // pred_region
      _
    $region29: #{subsampling_forward.1} parent=1 // pred_fallthru
      _
    // Predicated region
    $region30: #{subsampling_forward.1} parent=1 // pred_check
      _
    $region31: #{subsampling_forward.1} parent=1 // pred_check_branch
      %244 = sbr.rel (0) target = $region33
    $region32: #{subsampling_forward.1} parent=1 // pred_region
      _
    $region33: #{subsampling_forward.1} parent=1 // pred_fallthru
      _
    %245 = vsyncpa [#allocation3], 1
    %246 = vsyncpa [#allocation5], 1

</llo_original>
